<compile_context>
chip_gen: v7x
topology: tpu7x:2x2x1
jax: 0.10.0
libtpu: 0.0.40
codegen_flags: <defaults>
</compile_context>

<pallas_src>
from functools import partial

import jax
import jax.numpy as jnp
from jax.experimental import pallas as pl
from jax.experimental.pallas import tpu as pltpu


def _round_up(x, m):
    return ((x + m - 1) // m) * m


def _choose_batch_tile(batch):
    """Pick the batch tile: minimize padded (zero) rows first, then prefer
    >=2 grid steps (v7x megacore), then larger tiles (fewer ~0.35us steps)."""
    best = None
    for tb in (256, 128, 64, 32, 16):
        b_p = _round_up(max(batch, 1), tb)
        steps = b_p // tb
        key = (b_p - batch, 0 if steps >= 2 else 1, -tb)
        if best is None or key < best[0]:
            best = (key, tb, b_p)
    return best[1], best[2]


def _mlp_kernel(x_ref, w1_ref, b1_ref, w2_ref, b2_ref, w3_ref, b3_ref, o_ref):
    # One batch tile of the fused 3-layer MLP.  Matmul operands are bf16 so the
    # MXU runs at bf16 rate; accumulation + bias + ReLU happen in f32.
    x = x_ref[...]                                                    # (TB, IN) bf16
    h1 = jnp.dot(x, w1_ref[...], preferred_element_type=jnp.float32) + b1_ref[...]
    h1 = jnp.maximum(h1, 0.0).astype(jnp.bfloat16)                    # ReLU
    h2 = jnp.dot(h1, w2_ref[...], preferred_element_type=jnp.float32) + b2_ref[...]
    h2 = jnp.maximum(h2, 0.0).astype(jnp.bfloat16)                    # ReLU
    h3 = jnp.dot(h2, w3_ref[...], preferred_element_type=jnp.float32) + b3_ref[...]
    o_ref[...] = h3.astype(o_ref.dtype)                               # (TB, C) f32


def prepare_params(params):
    """One-time weight preparation — cache the result, do NOT call per forward.

    Casts matmul weights to bf16 (MXU-native) and reshapes biases to a
    broadcastable (1, N) f32.  Feature dims are NOT padded: full-dim blocks
    are legal on TPU and padding only inflates HBM traffic.
    PyTorch nn.Linear stores weight as (out, in); here weights are (in, out)
    so the kernel computes x @ W + b directly.
    """
    return {
        "w1": params["w1"].astype(jnp.bfloat16),
        "b1": params["b1"].reshape(1, -1).astype(jnp.float32),
        "w2": params["w2"].astype(jnp.bfloat16),
        "b2": params["b2"].reshape(1, -1).astype(jnp.float32),
        "w3": params["w3"].astype(jnp.bfloat16),
        "b3": params["b3"].reshape(1, -1).astype(jnp.float32),
    }


@partial(jax.jit, static_argnames=("single_buffer_weights",))
def _forward(x, prepared, single_buffer_weights=True):
    B = x.shape[0]
    w1, b1 = prepared["w1"], prepared["b1"]
    w2, b2 = prepared["w2"], prepared["b2"]
    w3, b3 = prepared["w3"], prepared["b3"]
    in_size, hidden = w1.shape
    num_classes = w3.shape[1]

    tb, b_p = _choose_batch_tile(B)

    # Only the activation is cast/padded per call (weights were prepared once).
    # Padded zero rows are exact and sliced off below.
    x_p = x.astype(jnp.bfloat16)
    if b_p != B:
        x_p = jnp.pad(x_p, ((0, b_p - B), (0, 0)))

    grid = (b_p // tb,)

    flops = 2 * b_p * (in_size * hidden + hidden * hidden + hidden * num_classes)
    bytes_accessed = (x_p.size * 2
                      + (w1.size + w2.size + w3.size) * 2
                      + (b1.size + b2.size + b3.size) * 4
                      + b_p * num_classes * 4)

    # VMEM footprint: double-buffered x/out tiles, single-buffered resident
    # weights/biases, in-kernel f32/bf16 intermediates, compiler scratch margin.
    weight_buffers = 1 if single_buffer_weights else 2
    vmem_bytes = (
        2 * (tb * in_size * 2 + tb * num_classes * 4)            # pipelined x / out
        + weight_buffers * (w1.size + w2.size + w3.size) * 2     # bf16 weights
        + weight_buffers * (b1.size + b2.size + b3.size) * 4     # f32 biases
        + 2 * tb * hidden * 4 + 2 * tb * hidden * 2              # h1/h2 f32 + bf16 copies
        + tb * num_classes * 4                                   # final f32 accumulator
        + (1 << 20))                                             # compiler internal scratch
    compiler_kwargs = dict(dimension_semantics=("parallel",))
    if vmem_bytes > 16 * 1024 * 1024:
        # Keep headroom on v7x (64 MiB physical VMEM): cap scoped limit at 48 MiB.
        compiler_kwargs["vmem_limit_bytes"] = min(
            _round_up(vmem_bytes + vmem_bytes // 4, 1 << 20), 48 * 1024 * 1024)
    # TODO(synk): for large hidden sizes (~1536+ on v7x, ~3072+ on v5e/v6e) the
    # resident weights no longer fit comfortably in VMEM — add a K/N-tiling
    # grid axis over w2/w3 with an f32 accumulator instead of full residency.

    # Constant index_map -> weights stay resident; single buffer saves VMEM.
    resident = dict(pipeline_mode=pl.Buffered(1)) if single_buffer_weights else {}

    out_p = pl.pallas_call(
        _mlp_kernel,
        out_shape=jax.ShapeDtypeStruct((b_p, num_classes), jnp.float32),
        grid_spec=pltpu.PrefetchScalarGridSpec(
            num_scalar_prefetch=0,
            grid=grid,
            in_specs=[
                pl.BlockSpec((tb, in_size), lambda i: (i, 0)),                  # x: batch-tiled
                pl.BlockSpec((in_size, hidden), lambda i: (0, 0), **resident),  # w1
                pl.BlockSpec((1, hidden), lambda i: (0, 0), **resident),        # b1
                pl.BlockSpec((hidden, hidden), lambda i: (0, 0), **resident),   # w2
                pl.BlockSpec((1, hidden), lambda i: (0, 0), **resident),        # b2
                pl.BlockSpec((hidden, num_classes), lambda i: (0, 0), **resident),  # w3
                pl.BlockSpec((1, num_classes), lambda i: (0, 0), **resident),   # b3
            ],
            out_specs=pl.BlockSpec((tb, num_classes), lambda i: (i, 0)),
        ),
        compiler_params=pltpu.CompilerParams(**compiler_kwargs),
        cost_estimate=pl.CostEstimate(
            flops=flops, transcendentals=0, bytes_accessed=bytes_accessed),
    )(x_p, w1, b1, w2, b2, w3, b3)

    out = out_p[:B] if b_p != B else out_p
    # torch.reshape(out, (-1, num_classes)) — a no-op for 2-D input; kept for
    # higher-rank-input parity with the PyTorch module.
    return out.reshape(-1, num_classes)


_SINGLE_BUFFER_OK = True


def neural_net_forward(x, prepared):
    """Pallas implementation of NeuralNet.forward.

    x: [B, input_size] float32
    prepared: output of prepare_params() (bf16 weights, (1, N) f32 biases)
    returns: [B, num_classes] float32
    """
    global _SINGLE_BUFFER_OK
    if _SINGLE_BUFFER_OK:
        try:
            return _forward(x, prepared, single_buffer_weights=True)
        except Exception:
            # TODO(synk): drop this fallback once pl.Buffered(1) single-buffer
            # support is confirmed on the deployment jax version.
            _SINGLE_BUFFER_OK = False
    return _forward(x, prepared, single_buffer_weights=False)


def init_params(key, input_size, hidden_size, num_classes):
    """nn.Linear-shaped params (weights stored as (in, out), biases 1-D)."""
    k1, k2, k3, k4, k5, k6 = jax.random.split(key, 6)

    def uniform(k, shape, fan_in):
        bound = 1.0 / jnp.sqrt(fan_in)
        return jax.random.uniform(k, shape, jnp.float32, -bound, bound)

    return {
        "w1": uniform(k1, (input_size, hidden_size), input_size),
        "b1": uniform(k2, (hidden_size,), input_size),
        "w2": uniform(k3, (hidden_size, hidden_size), hidden_size),
        "b2": uniform(k4, (hidden_size,), hidden_size),
        "w3": uniform(k5, (hidden_size, num_classes), hidden_size),
        "b3": uniform(k6, (num_classes,), hidden_size),
    }


def _reference_forward(x, p):
    """Numerics-matched reference: bf16 matmul operands, f32 accumulation."""
    bf = jnp.bfloat16

    def m(a, w):
        return jnp.dot(a.astype(bf).astype(jnp.float32),
                       w.astype(bf).astype(jnp.float32))

    h1 = jnp.maximum(m(x, p["w1"]) + p["b1"], 0.0)
    h2 = jnp.maximum(m(h1, p["w2"]) + p["b2"], 0.0)
    out = m(h2, p["w3"]) + p["b3"]
    return out.reshape(-1, p["w3"].shape[1])


if __name__ == "__main__":
    B = 2
    input_size = 32
    hidden_size = 32
    num_classes = 8
    voc_size = 100  # unused by forward(); kept for interface parity

    key = jax.random.PRNGKey(0)
    k_x, k_p = jax.random.split(key)
    x = jax.random.normal(k_x, (B, input_size), jnp.float32)
    raw_params = init_params(k_p, input_size, hidden_size, num_classes)

    # One-time weight preparation (outside the per-call hot path).
    prepared = prepare_params(raw_params)
    prepared = jax.tree_util.tree_map(jax.block_until_ready, prepared)

    out = neural_net_forward(x, prepared)
    out = jax.block_until_ready(out)

    ref = _reference_forward(x, raw_params)
    assert out.shape == (B, num_classes), out.shape
    assert jnp.allclose(out, ref, atol=1e-2, rtol=1e-2), (
        "mismatch vs reference", float(jnp.max(jnp.abs(out - ref))))

    print("KERNEL_OK")
</pallas_src>

<mosaic_0001>
module attributes {stable_mosaic.version = 11 : i64} {
  func.func @_mlp_kernel(%arg0: i32, %arg1: memref<16x32xbf16, #tpu.memory_space<vmem>>, %arg2: memref<32x32xbf16, #tpu.memory_space<vmem>>, %arg3: memref<1x32xf32, #tpu.memory_space<vmem>>, %arg4: memref<32x32xbf16, #tpu.memory_space<vmem>>, %arg5: memref<1x32xf32, #tpu.memory_space<vmem>>, %arg6: memref<32x8xbf16, #tpu.memory_space<vmem>>, %arg7: memref<1x8xf32, #tpu.memory_space<vmem>>, %arg8: memref<16x8xf32, #tpu.memory_space<vmem>>) attributes {dimension_semantics = [#tpu.dimension_semantics<parallel>], iteration_bounds = array<i64: 1>, scalar_prefetch = 0 : i64, scratch_operands = 0 : i64, tpu.core_type = #tpu.core_type<tc>, window_params = [{transform_indices = @transform_0, window_bounds = array<i64: 16, 32>}, {pipeline_mode = #tpu.pipeline_mode<synchronous>, transform_indices = @transform_1, window_bounds = array<i64: 32, 32>}, {pipeline_mode = #tpu.pipeline_mode<synchronous>, transform_indices = @transform_2, window_bounds = array<i64: 1, 32>}, {pipeline_mode = #tpu.pipeline_mode<synchronous>, transform_indices = @transform_3, window_bounds = array<i64: 32, 32>}, {pipeline_mode = #tpu.pipeline_mode<synchronous>, transform_indices = @transform_4, window_bounds = array<i64: 1, 32>}, {pipeline_mode = #tpu.pipeline_mode<synchronous>, transform_indices = @transform_5, window_bounds = array<i64: 32, 8>}, {pipeline_mode = #tpu.pipeline_mode<synchronous>, transform_indices = @transform_6, window_bounds = array<i64: 1, 8>}, {transform_indices = @transform_7, window_bounds = array<i64: 16, 8>}]} {
    %c0 = arith.constant 0 : index
    %c0_0 = arith.constant 0 : index
    %0 = vector.load %arg1[%c0, %c0_0] : memref<16x32xbf16, #tpu.memory_space<vmem>>, vector<16x32xbf16>
    %c0_1 = arith.constant 0 : index
    %c0_2 = arith.constant 0 : index
    %1 = vector.load %arg2[%c0_1, %c0_2] : memref<32x32xbf16, #tpu.memory_space<vmem>>, vector<32x32xbf16>
    %cst = arith.constant dense<0.000000e+00> : vector<16x32xf32>
    %2 = tpu.matmul %0, %1, %cst {dimension_numbers = #tpu.dot_dimension_numbers<[1], [0], [0], [1], [0, 0, 1, 1], [], []>} : vector<16x32xbf16>, vector<32x32xbf16>, vector<16x32xf32> -> vector<16x32xf32>
    %c0_3 = arith.constant 0 : index
    %c0_4 = arith.constant 0 : index
    %3 = vector.load %arg3[%c0_3, %c0_4] : memref<1x32xf32, #tpu.memory_space<vmem>>, vector<1x32xf32>
    %4 = vector.broadcast %3 : vector<1x32xf32> to vector<16x32xf32>
    %5 = arith.addf %2, %4 : vector<16x32xf32>
    %cst_5 = arith.constant 0.000000e+00 : f32
    %6 = vector.broadcast %cst_5 : f32 to vector<16x32xf32>
    %7 = arith.maximumf %5, %6 : vector<16x32xf32>
    %8 = arith.truncf %7 : vector<16x32xf32> to vector<16x32xbf16>
    %c0_6 = arith.constant 0 : index
    %c0_7 = arith.constant 0 : index
    %9 = vector.load %arg4[%c0_6, %c0_7] : memref<32x32xbf16, #tpu.memory_space<vmem>>, vector<32x32xbf16>
    %cst_8 = arith.constant dense<0.000000e+00> : vector<16x32xf32>
    %10 = tpu.matmul %8, %9, %cst_8 {dimension_numbers = #tpu.dot_dimension_numbers<[1], [0], [0], [1], [0, 0, 1, 1], [], []>} : vector<16x32xbf16>, vector<32x32xbf16>, vector<16x32xf32> -> vector<16x32xf32>
    %c0_9 = arith.constant 0 : index
    %c0_10 = arith.constant 0 : index
    %11 = vector.load %arg5[%c0_9, %c0_10] : memref<1x32xf32, #tpu.memory_space<vmem>>, vector<1x32xf32>
    %12 = vector.broadcast %11 : vector<1x32xf32> to vector<16x32xf32>
    %13 = arith.addf %10, %12 : vector<16x32xf32>
    %cst_11 = arith.constant 0.000000e+00 : f32
    %14 = vector.broadcast %cst_11 : f32 to vector<16x32xf32>
    %15 = arith.maximumf %13, %14 : vector<16x32xf32>
    %16 = arith.truncf %15 : vector<16x32xf32> to vector<16x32xbf16>
    %c0_12 = arith.constant 0 : index
    %c0_13 = arith.constant 0 : index
    %17 = vector.load %arg6[%c0_12, %c0_13] : memref<32x8xbf16, #tpu.memory_space<vmem>>, vector<32x8xbf16>
    %cst_14 = arith.constant dense<0.000000e+00> : vector<16x8xf32>
    %18 = tpu.matmul %16, %17, %cst_14 {dimension_numbers = #tpu.dot_dimension_numbers<[1], [0], [0], [1], [0, 0, 1, 1], [], []>} : vector<16x32xbf16>, vector<32x8xbf16>, vector<16x8xf32> -> vector<16x8xf32>
    %c0_15 = arith.constant 0 : index
    %c0_16 = arith.constant 0 : index
    %19 = vector.load %arg7[%c0_15, %c0_16] : memref<1x8xf32, #tpu.memory_space<vmem>>, vector<1x8xf32>
    %20 = vector.broadcast %19 : vector<1x8xf32> to vector<16x8xf32>
    %21 = arith.addf %18, %20 : vector<16x8xf32>
    %c0_17 = arith.constant 0 : index
    %c0_18 = arith.constant 0 : index
    %22 = vector.load %arg8[%c0_17, %c0_18] : memref<16x8xf32, #tpu.memory_space<vmem>>, vector<16x8xf32>
    tpu.vector_store %arg8[%c0_17, %c0_18], %21 {strides = array<i32>} : memref<16x8xf32, #tpu.memory_space<vmem>>, vector<16x8xf32>,
    return
  }
  func.func @transform_0(%arg0: i32) -> (i32, i32) {
    %c0_i32 = arith.constant 0 : i32
    %c0_i32_0 = arith.constant 0 : i32
    return %arg0, %c0_i32 : i32, i32
  }
  func.func @transform_1(%arg0: i32) -> (i32, i32) {
    %c0_i32 = arith.constant 0 : i32
    %c0_i32_0 = arith.constant 0 : i32
    %c0_i32_1 = arith.constant 0 : i32
    return %c0_i32, %c0_i32_0 : i32, i32
  }
  func.func @transform_2(%arg0: i32) -> (i32, i32) {
    %c0_i32 = arith.constant 0 : i32
    %c0_i32_0 = arith.constant 0 : i32
    %c0_i32_1 = arith.constant 0 : i32
    return %c0_i32, %c0_i32_0 : i32, i32
  }
  func.func @transform_3(%arg0: i32) -> (i32, i32) {
    %c0_i32 = arith.constant 0 : i32
    %c0_i32_0 = arith.constant 0 : i32
    %c0_i32_1 = arith.constant 0 : i32
    return %c0_i32, %c0_i32_0 : i32, i32
  }
  func.func @transform_4(%arg0: i32) -> (i32, i32) {
    %c0_i32 = arith.constant 0 : i32
    %c0_i32_0 = arith.constant 0 : i32
    %c0_i32_1 = arith.constant 0 : i32
    return %c0_i32, %c0_i32_0 : i32, i32
  }
  func.func @transform_5(%arg0: i32) -> (i32, i32) {
    %c0_i32 = arith.constant 0 : i32
    %c0_i32_0 = arith.constant 0 : i32
    %c0_i32_1 = arith.constant 0 : i32
    return %c0_i32, %c0_i32_0 : i32, i32
  }
  func.func @transform_6(%arg0: i32) -> (i32, i32) {
    %c0_i32 = arith.constant 0 : i32
    %c0_i32_0 = arith.constant 0 : i32
    %c0_i32_1 = arith.constant 0 : i32
    return %c0_i32, %c0_i32_0 : i32, i32
  }
  func.func @transform_7(%arg0: i32) -> (i32, i32) {
    %c0_i32 = arith.constant 0 : i32
    %c0_i32_0 = arith.constant 0 : i32
    return %arg0, %c0_i32 : i32, i32
  }
}

module attributes {stable_mosaic.version = 11 : i64} {
  func.func @_mlp_kernel(%arg0: i32, %arg1: memref<16x32xbf16, #tpu.memory_space<vmem>>, %arg2: memref<32x32xbf16, #tpu.memory_space<vmem>>, %arg3: memref<1x32xf32, #tpu.memory_space<vmem>>, %arg4: memref<32x32xbf16, #tpu.memory_space<vmem>>, %arg5: memref<1x32xf32, #tpu.memory_space<vmem>>, %arg6: memref<32x8xbf16, #tpu.memory_space<vmem>>, %arg7: memref<1x8xf32, #tpu.memory_space<vmem>>, %arg8: memref<16x8xf32, #tpu.memory_space<vmem>>) attributes {dimension_semantics = [#tpu.dimension_semantics<parallel>], iteration_bounds = array<i64: 1>, scalar_prefetch = 0 : i64, scratch_operands = 0 : i64, tpu.core_type = #tpu.core_type<tc>, window_params = [{transform_indices = @transform_0, window_bounds = array<i64: 16, 32>}, {pipeline_mode = #tpu.pipeline_mode<synchronous>, transform_indices = @transform_1, window_bounds = array<i64: 32, 32>}, {pipeline_mode = #tpu.pipeline_mode<synchronous>, transform_indices = @transform_2, window_bounds = array<i64: 1, 32>}, {pipeline_mode = #tpu.pipeline_mode<synchronous>, transform_indices = @transform_3, window_bounds = array<i64: 32, 32>}, {pipeline_mode = #tpu.pipeline_mode<synchronous>, transform_indices = @transform_4, window_bounds = array<i64: 1, 32>}, {pipeline_mode = #tpu.pipeline_mode<synchronous>, transform_indices = @transform_5, window_bounds = array<i64: 32, 8>}, {pipeline_mode = #tpu.pipeline_mode<synchronous>, transform_indices = @transform_6, window_bounds = array<i64: 1, 8>}, {transform_indices = @transform_7, window_bounds = array<i64: 16, 8>}]} {
    %c0 = arith.constant 0 : index
    %c0_0 = arith.constant 0 : index
    %0 = vector.load %arg1[%c0, %c0_0] : memref<16x32xbf16, #tpu.memory_space<vmem>>, vector<16x32xbf16>
    %c0_1 = arith.constant 0 : index
    %c0_2 = arith.constant 0 : index
    %1 = vector.load %arg2[%c0_1, %c0_2] : memref<32x32xbf16, #tpu.memory_space<vmem>>, vector<32x32xbf16>
    %cst = arith.constant dense<0.000000e+00> : vector<16x32xf32>
    %2 = tpu.matmul %0, %1, %cst {dimension_numbers = #tpu.dot_dimension_numbers<[1], [0], [0], [1], [0, 0, 1, 1], [], []>} : vector<16x32xbf16>, vector<32x32xbf16>, vector<16x32xf32> -> vector<16x32xf32>
    %c0_3 = arith.constant 0 : index
    %c0_4 = arith.constant 0 : index
    %3 = vector.load %arg3[%c0_3, %c0_4] : memref<1x32xf32, #tpu.memory_space<vmem>>, vector<1x32xf32>
    %4 = vector.broadcast %3 : vector<1x32xf32> to vector<16x32xf32>
    %5 = arith.addf %2, %4 : vector<16x32xf32>
    %cst_5 = arith.constant 0.000000e+00 : f32
    %6 = vector.broadcast %cst_5 : f32 to vector<16x32xf32>
    %7 = arith.maximumf %5, %6 : vector<16x32xf32>
    %8 = arith.truncf %7 : vector<16x32xf32> to vector<16x32xbf16>
    %c0_6 = arith.constant 0 : index
    %c0_7 = arith.constant 0 : index
    %9 = vector.load %arg4[%c0_6, %c0_7] : memref<32x32xbf16, #tpu.memory_space<vmem>>, vector<32x32xbf16>
    %cst_8 = arith.constant dense<0.000000e+00> : vector<16x32xf32>
    %10 = tpu.matmul %8, %9, %cst_8 {dimension_numbers = #tpu.dot_dimension_numbers<[1], [0], [0], [1], [0, 0, 1, 1], [], []>} : vector<16x32xbf16>, vector<32x32xbf16>, vector<16x32xf32> -> vector<16x32xf32>
    %c0_9 = arith.constant 0 : index
    %c0_10 = arith.constant 0 : index
    %11 = vector.load %arg5[%c0_9, %c0_10] : memref<1x32xf32, #tpu.memory_space<vmem>>, vector<1x32xf32>
    %12 = vector.broadcast %11 : vector<1x32xf32> to vector<16x32xf32>
    %13 = arith.addf %10, %12 : vector<16x32xf32>
    %cst_11 = arith.constant 0.000000e+00 : f32
    %14 = vector.broadcast %cst_11 : f32 to vector<16x32xf32>
    %15 = arith.maximumf %13, %14 : vector<16x32xf32>
    %16 = arith.truncf %15 : vector<16x32xf32> to vector<16x32xbf16>
    %c0_12 = arith.constant 0 : index
    %c0_13 = arith.constant 0 : index
    %17 = vector.load %arg6[%c0_12, %c0_13] : memref<32x8xbf16, #tpu.memory_space<vmem>>, vector<32x8xbf16>
    %cst_14 = arith.constant dense<0.000000e+00> : vector<16x8xf32>
    %18 = tpu.matmul %16, %17, %cst_14 {dimension_numbers = #tpu.dot_dimension_numbers<[1], [0], [0], [1], [0, 0, 1, 1], [], []>} : vector<16x32xbf16>, vector<32x8xbf16>, vector<16x8xf32> -> vector<16x8xf32>
    %c0_15 = arith.constant 0 : index
    %c0_16 = arith.constant 0 : index
    %19 = vector.load %arg7[%c0_15, %c0_16] : memref<1x8xf32, #tpu.memory_space<vmem>>, vector<1x8xf32>
    %20 = vector.broadcast %19 : vector<1x8xf32> to vector<16x8xf32>
    %21 = arith.addf %18, %20 : vector<16x8xf32>
    %c0_17 = arith.constant 0 : index
    %c0_18 = arith.constant 0 : index
    %22 = vector.load %arg8[%c0_17, %c0_18] : memref<16x8xf32, #tpu.memory_space<vmem>>, vector<16x8xf32>
    tpu.vector_store %arg8[%c0_17, %c0_18], %21 {strides = array<i32>} : memref<16x8xf32, #tpu.memory_space<vmem>>, vector<16x8xf32>,
    return
  }
  func.func @transform_0(%arg0: i32) -> (i32, i32) {
    %c0_i32 = arith.constant 0 : i32
    %c0_i32_0 = arith.constant 0 : i32
    return %arg0, %c0_i32 : i32, i32
  }
  func.func @transform_1(%arg0: i32) -> (i32, i32) {
    %c0_i32 = arith.constant 0 : i32
    %c0_i32_0 = arith.constant 0 : i32
    %c0_i32_1 = arith.constant 0 : i32
    return %c0_i32, %c0_i32_0 : i32, i32
  }
  func.func @transform_2(%arg0: i32) -> (i32, i32) {
    %c0_i32 = arith.constant 0 : i32
    %c0_i32_0 = arith.constant 0 : i32
    %c0_i32_1 = arith.constant 0 : i32
    return %c0_i32, %c0_i32_0 : i32, i32
  }
  func.func @transform_3(%arg0: i32) -> (i32, i32) {
    %c0_i32 = arith.constant 0 : i32
    %c0_i32_0 = arith.constant 0 : i32
    %c0_i32_1 = arith.constant 0 : i32
    return %c0_i32, %c0_i32_0 : i32, i32
  }
  func.func @transform_4(%arg0: i32) -> (i32, i32) {
    %c0_i32 = arith.constant 0 : i32
    %c0_i32_0 = arith.constant 0 : i32
    %c0_i32_1 = arith.constant 0 : i32
    return %c0_i32, %c0_i32_0 : i32, i32
  }
  func.func @transform_5(%arg0: i32) -> (i32, i32) {
    %c0_i32 = arith.constant 0 : i32
    %c0_i32_0 = arith.constant 0 : i32
    %c0_i32_1 = arith.constant 0 : i32
    return %c0_i32, %c0_i32_0 : i32, i32
  }
  func.func @transform_6(%arg0: i32) -> (i32, i32) {
    %c0_i32 = arith.constant 0 : i32
    %c0_i32_0 = arith.constant 0 : i32
    %c0_i32_1 = arith.constant 0 : i32
    return %c0_i32, %c0_i32_0 : i32, i32
  }
  func.func @transform_7(%arg0: i32) -> (i32, i32) {
    %c0_i32 = arith.constant 0 : i32
    %c0_i32_0 = arith.constant 0 : i32
    return %arg0, %c0_i32 : i32, i32
  }
}

</mosaic_0001>

<llo_original>
// kernel: _forward.1
$region0: #{_forward.1}
  #allocation0 [shape = 'u32[]', space=smem, size = 0x4, offset = 0x4, fixed_abs, tag = 'smem constant byte address 0x4 - core index']
  #allocation1 [shape = 'u32[144,128]{1,0:T(1,128)}', space=vmem, size = 0x12000, scoped, tag = 'internal scratch']
  %s0 = inlined_call_operand.vmem [shape: bf16[16,32], index: 0, kind: input, shape index: {}]
  %s1 = inlined_call_operand.vmem [shape: bf16[32,32], index: 1, kind: input, shape index: {}]
  %s2 = inlined_call_operand.vmem [shape: f32[1,32], index: 2, kind: input, shape index: {}]
  %s3 = inlined_call_operand.vmem [shape: bf16[32,32], index: 3, kind: input, shape index: {}]
  %s4 = inlined_call_operand.vmem [shape: f32[1,32], index: 4, kind: input, shape index: {}]
  %s5 = inlined_call_operand.vmem [shape: bf16[32,8], index: 5, kind: input, shape index: {}]
  %s6 = inlined_call_operand.vmem [shape: f32[1,8], index: 6, kind: input, shape index: {}]
  %s7 = inlined_call_operand.vmem [shape: f32[16,8], index: 7, kind: output, shape index: {}]
  %s8 = sld [smem:[#allocation0]]
  $region38: #{_forward.1} parent=0
    _
  %s10 = ssub.s32 1, %s8
  %s11 = scalar_select 0, %s10, %s8
  // Predicated region
  $region2: #{_forward.1} parent=0 // pred_check
    _
  $region3: #{_forward.1} parent=0 // pred_check_branch
    %13 = sbr.rel (0) target = $region5
  $region4: #{_forward.1} parent=0 // pred_region
    _
  $region5: #{_forward.1} parent=0 // pred_fallthru
    _
  // Predicated region
  $region6: #{_forward.1} parent=0 // pred_check
    _
  $region7: #{_forward.1} parent=0 // pred_check_branch
    %15 = sbr.rel (0) target = $region9
  $region8: #{_forward.1} parent=0 // pred_region
    _
  $region9: #{_forward.1} parent=0 // pred_fallthru
    _
  // Predicated region
  $region10: #{_forward.1} parent=0 // pred_check
    _
  $region11: #{_forward.1} parent=0 // pred_check_branch
    %17 = sbr.rel (0) target = $region13
  $region12: #{_forward.1} parent=0 // pred_region
    _
  $region13: #{_forward.1} parent=0 // pred_fallthru
    _
  // Predicated region
  $region14: #{_forward.1} parent=0 // pred_check
    _
  $region15: #{_forward.1} parent=0 // pred_check_branch
    %19 = sbr.rel (0) target = $region17
  $region16: #{_forward.1} parent=0 // pred_region
    _
  $region17: #{_forward.1} parent=0 // pred_fallthru
    _
  // Predicated region
  $region18: #{_forward.1} parent=0 // pred_check
    _
  $region19: #{_forward.1} parent=0 // pred_check_branch
    %21 = sbr.rel (0) target = $region21
  $region20: #{_forward.1} parent=0 // pred_region
    _
  $region21: #{_forward.1} parent=0 // pred_fallthru
    _
  // Predicated region
  $region22: #{_forward.1} parent=0 // pred_check
    _
  $region23: #{_forward.1} parent=0 // pred_check_branch
    %23 = sbr.rel (0) target = $region25
  $region24: #{_forward.1} parent=0 // pred_region
    _
  $region25: #{_forward.1} parent=0 // pred_fallthru
    _
  // Predicated region
  $region26: #{_forward.1} parent=0 // pred_check
    _
  $region27: #{_forward.1} parent=0 // pred_check_branch
    %25 = sbr.rel (0) target = $region29
  $region28: #{_forward.1} parent=0 // pred_region
    _
  $region29: #{_forward.1} parent=0 // pred_fallthru
    _
  %v27 = vld [vmem:[%s0] sm:$0xf]
  %v28 = vld [vmem:[%s0 + $0x4] sm:$0xf]
  %v29 = vld [vmem:[%s1] sm:$0xf]
  %v30 = vld [vmem:[%s1 + $0x4] sm:$0xf]
  %v31 = vld [vmem:[%s1 + $0x8] sm:$0xf]
  %v32 = vld [vmem:[%s1 + $0xc] sm:$0xf]
  %v33 = vld [vmem:[%s2] sm:$0x1]
  %v35 = vlaneseq
  %v36 = vshrl.u32 %v35, 7
  %v37 = vsub.s32 0, %v36
  %v38 = vrot.slane %v33, %v37
  %v42 = vunpack.c.l.b16 %v27
  %v43 = vunpack.c.l.b16 %v28
  %v44 = vpack.c.b16 %v43, %v42
  %v49 = vunpack.c.l.b16 %v29
  %v50 = vunpack.c.l.b16 %v30
  %v51 = vunpack.c.l.b16 %v31
  %v52 = vunpack.c.l.b16 %v32
  %v53 = vpack.c.b16 %v50, %v49
  %v54 = vpack.c.b16 %v52, %v51
  %vm57 = vcmask 261120
  %v59 = vsel %vm57, %v44, 0
  %61 = vmatprep.subr.bf16.mxu0 0
  %62 = vmatpush1.bf16.msra.mxu0 %v53
  %63 = vmatprep.subr.bf16.mxu0 0
  %64 = vmatpush1.bf16.msra.mxu0 %v54
  %65 = vmatprep.subr.bf16.mxu0 0
  %66 = vmatpush1.bf16.msra.mxu0 0
  %67 = vmatprep.subr.bf16.mxu0 0
  %68 = vmatpush1.bf16.msra.mxu0 0
  %69 = vmatprep.subr.bf16.mxu0 0
  %70 = vmatpush1.bf16.msra.mxu0 0
  %71 = vmatprep.subr.bf16.mxu0 0
  %72 = vmatpush1.bf16.msra.mxu0 0
  %73 = vmatprep.subr.bf16.mxu0 0
  %74 = vmatpush1.bf16.msra.mxu0 0
  %75 = vmatprep.subr.bf16.mxu0 0
  %76 = vmatpush1.bf16.msra.mxu0 0
  %77 = vmatprep.subr.bf16.mxu0 0
  %78 = vmatpush1.bf16.msra.mxu0 0
  %79 = vmatprep.subr.bf16.mxu0 0
  %80 = vmatpush1.bf16.msra.mxu0 0
  %81 = vmatprep.subr.bf16.mxu0 0
  %82 = vmatpush1.bf16.msra.mxu0 0
  %83 = vmatprep.subr.bf16.mxu0 0
  %84 = vmatpush1.bf16.msra.mxu0 0
  %85 = vmatprep.subr.bf16.mxu0 0
  %86 = vmatpush1.bf16.msra.mxu0 0
  %87 = vmatprep.subr.bf16.mxu0 0
  %88 = vmatpush1.bf16.msra.mxu0 0
  %89 = vmatprep.subr.bf16.mxu0 0
  %90 = vmatpush1.bf16.msra.mxu0 0
  %91 = vmatprep.subr.bf16.mxu0 0
  %92 = vmatpush1.bf16.msra.mxu0 0
  %93 = vmatprep.mubr.bf16.mxu0 0
  %94 = vmatmul.mubr.bf16.gmra.mrb[0].mxu0 %v59
  %v95 = vpop.f32.mrb[0].mxu0
  %v96 = vadd.f32 %v38, %v95
  %v97 = vpop.f32.mrb[0].mxu0
  %v98 = vpop.f32.mrb[0].mxu0
  %v99 = vadd.f32 %v38, %v98
  %v100 = vpop.f32.mrb[0].mxu0
  %101 = vdwg.mxu0
  %v102 = vmax.f32 %v96, 0.0
  %v103 = vmax.f32 %v99, 0.0
  %v104 = vpack.c.bf16 %v103, %v102
  %v105 = vld [vmem:[%s3] sm:$0xf]
  %v106 = vld [vmem:[%s3 + $0x4] sm:$0xf]
  %v107 = vld [vmem:[%s3 + $0x8] sm:$0xf]
  %v108 = vld [vmem:[%s3 + $0xc] sm:$0xf]
  %v109 = vld [vmem:[%s4] sm:$0x1]
  %v111 = vlaneseq
  %v112 = vshrl.u32 %v111, 7
  %v113 = vsub.s32 0, %v112
  %v114 = vrot.slane %v109, %v113
  %v120 = vunpack.c.l.b16 %v105
  %v121 = vunpack.c.l.b16 %v106
  %v122 = vunpack.c.l.b16 %v107
  %v123 = vunpack.c.l.b16 %v108
  %v124 = vpack.c.b16 %v121, %v120
  %v125 = vpack.c.b16 %v123, %v122
  %v129 = vsel %vm57, %v104, 0
  %131 = vmatprep.subr.bf16.mxu0 0
  %132 = vmatpush1.bf16.msra.mxu0 %v124
  %133 = vmatprep.subr.bf16.mxu0 0
  %134 = vmatpush1.bf16.msra.mxu0 %v125
  %135 = vmatprep.subr.bf16.mxu0 0
  %136 = vmatpush1.bf16.msra.mxu0 0
  %137 = vmatprep.subr.bf16.mxu0 0
  %138 = vmatpush1.bf16.msra.mxu0 0
  %139 = vmatprep.subr.bf16.mxu0 0
  %140 = vmatpush1.bf16.msra.mxu0 0
  %141 = vmatprep.subr.bf16.mxu0 0
  %142 = vmatpush1.bf16.msra.mxu0 0
  %143 = vmatprep.subr.bf16.mxu0 0
  %144 = vmatpush1.bf16.msra.mxu0 0
  %145 = vmatprep.subr.bf16.mxu0 0
  %146 = vmatpush1.bf16.msra.mxu0 0
  %147 = vmatprep.subr.bf16.mxu0 0
  %148 = vmatpush1.bf16.msra.mxu0 0
  %149 = vmatprep.subr.bf16.mxu0 0
  %150 = vmatpush1.bf16.msra.mxu0 0
  %151 = vmatprep.subr.bf16.mxu0 0
  %152 = vmatpush1.bf16.msra.mxu0 0
  %153 = vmatprep.subr.bf16.mxu0 0
  %154 = vmatpush1.bf16.msra.mxu0 0
  %155 = vmatprep.subr.bf16.mxu0 0
  %156 = vmatpush1.bf16.msra.mxu0 0
  %157 = vmatprep.subr.bf16.mxu0 0
  %158 = vmatpush1.bf16.msra.mxu0 0
  %159 = vmatprep.subr.bf16.mxu0 0
  %160 = vmatpush1.bf16.msra.mxu0 0
  %161 = vmatprep.subr.bf16.mxu0 0
  %162 = vmatpush1.bf16.msra.mxu0 0
  %163 = vmatprep.mubr.bf16.mxu0 0
  %164 = vmatmul.mubr.bf16.gmra.mrb[0].mxu0 %v129
  %v165 = vpop.f32.mrb[0].mxu0
  %v166 = vadd.f32 %v114, %v165
  %v167 = vpop.f32.mrb[0].mxu0
  %v168 = vpop.f32.mrb[0].mxu0
  %v169 = vadd.f32 %v114, %v168
  %v170 = vpop.f32.mrb[0].mxu0
  %171 = vdwg.mxu0
  %v172 = vmax.f32 %v166, 0.0
  %v173 = vmax.f32 %v169, 0.0
  %v174 = vpack.c.bf16 %v173, %v172
  %v175 = vld [vmem:[%s5] sm:$0xf]
  %v176 = vld [vmem:[%s5 + $0x4] sm:$0xf]
  %v177 = vld [vmem:[%s5 + $0x8] sm:$0xf]
  %v178 = vld [vmem:[%s5 + $0xc] sm:$0xf]
  %v179 = vld [vmem:[%s6] sm:$0x1]
  %v181 = vlaneseq
  %v182 = vshrl.u32 %v181, 7
  %v183 = vsub.s32 0, %v182
  %v184 = vrot.slane %v179, %v183
  %v190 = vunpack.c.l.b16 %v175
  %v191 = vunpack.c.l.b16 %v176
  %v192 = vunpack.c.l.b16 %v177
  %v193 = vunpack.c.l.b16 %v178
  %v194 = vpack.c.b16 %v191, %v190
  %v195 = vpack.c.b16 %v193, %v192
  %v199 = vsel %vm57, %v174, 0
  %201 = vmatprep.subr.bf16.mxu0 0
  %202 = vmatpush1.bf16.msra.mxu0 %v194
  %203 = vmatprep.subr.bf16.mxu0 0
  %204 = vmatpush1.bf16.msra.mxu0 %v195
  %205 = vmatprep.subr.bf16.mxu0 0
  %206 = vmatpush1.bf16.msra.mxu0 0
  %207 = vmatprep.subr.bf16.mxu0 0
  %208 = vmatpush1.bf16.msra.mxu0 0
  %209 = vmatprep.subr.bf16.mxu0 0
  %210 = vmatpush1.bf16.msra.mxu0 0
  %211 = vmatprep.subr.bf16.mxu0 0
  %212 = vmatpush1.bf16.msra.mxu0 0
  %213 = vmatprep.subr.bf16.mxu0 0
  %214 = vmatpush1.bf16.msra.mxu0 0
  %215 = vmatprep.subr.bf16.mxu0 0
  %216 = vmatpush1.bf16.msra.mxu0 0
  %217 = vmatprep.subr.bf16.mxu0 0
  %218 = vmatpush1.bf16.msra.mxu0 0
  %219 = vmatprep.subr.bf16.mxu0 0
  %220 = vmatpush1.bf16.msra.mxu0 0
  %221 = vmatprep.subr.bf16.mxu0 0
  %222 = vmatpush1.bf16.msra.mxu0 0
  %223 = vmatprep.subr.bf16.mxu0 0
  %224 = vmatpush1.bf16.msra.mxu0 0
  %225 = vmatprep.subr.bf16.mxu0 0
  %226 = vmatpush1.bf16.msra.mxu0 0
  %227 = vmatprep.subr.bf16.mxu0 0
  %228 = vmatpush1.bf16.msra.mxu0 0
  %229 = vmatprep.subr.bf16.mxu0 0
  %230 = vmatpush1.bf16.msra.mxu0 0
  %231 = vmatprep.subr.bf16.mxu0 0
  %232 = vmatpush1.bf16.msra.mxu0 0
  %233 = vmatprep.mubr.bf16.mxu0 0
  %234 = vmatmul.mubr.bf16.gmra.mrb[0].mxu0 %v199
  %v235 = vpop.f32.mrb[0].mxu0
  %v236 = vadd.f32 %v184, %v235
  %v237 = vpop.f32.mrb[0].mxu0
  %v238 = vpop.f32.mrb[0].mxu0
  %v239 = vadd.f32 %v184, %v238
  %v240 = vpop.f32.mrb[0].mxu0
  %241 = vdwg.mxu0
  %vm242 = vcmask 64512
  %243 = vst.msk [vmem:[%s7] sm:$0xff] %vm242, %v236
  %244 = vst.msk [vmem:[%s7 + $0x8] sm:$0xff] %vm242, %v239
  // Predicated region
  $region30: #{_forward.1} parent=0 // pred_check
    _
  $region31: #{_forward.1} parent=0 // pred_check_branch
    %246 = sbr.rel (0) target = $region33
  $region32: #{_forward.1} parent=0 // pred_region
    _
  $region33: #{_forward.1} parent=0 // pred_fallthru
    _
  // Predicated region
  $region34: #{_forward.1} parent=0 // pred_check
    _
  $region35: #{_forward.1} parent=0 // pred_check_branch
    %248 = sbr.rel (0) target = $region37
  $region36: #{_forward.1} parent=0 // pred_region
    _
  $region37: #{_forward.1} parent=0 // pred_fallthru
    _

// kernel: _forward.1
$region0: #{_forward.1}
  #allocation0 [shape = 'u32[]', space=smem, size = 0x4, offset = 0x4, fixed_abs, tag = 'smem constant byte address 0x4 - core index']
  #allocation1 [shape = 'u32[144,128]{1,0:T(1,128)}', space=vmem, size = 0x12000, scoped, tag = 'internal scratch']
  %s0 = inlined_call_operand.vmem [shape: bf16[16,32], index: 0, kind: input, shape index: {}]
  %s1 = inlined_call_operand.vmem [shape: bf16[32,32], index: 1, kind: input, shape index: {}]
  %s2 = inlined_call_operand.vmem [shape: f32[1,32], index: 2, kind: input, shape index: {}]
  %s3 = inlined_call_operand.vmem [shape: bf16[32,32], index: 3, kind: input, shape index: {}]
  %s4 = inlined_call_operand.vmem [shape: f32[1,32], index: 4, kind: input, shape index: {}]
  %s5 = inlined_call_operand.vmem [shape: bf16[32,8], index: 5, kind: input, shape index: {}]
  %s6 = inlined_call_operand.vmem [shape: f32[1,8], index: 6, kind: input, shape index: {}]
  %s7 = inlined_call_operand.vmem [shape: f32[16,8], index: 7, kind: output, shape index: {}]
  %s8 = sld [smem:[#allocation0]]
  $region38: #{_forward.1} parent=0
    _
  %s10 = ssub.s32 1, %s8
  %s11 = scalar_select 0, %s10, %s8
  // Predicated region
  $region2: #{_forward.1} parent=0 // pred_check
    _
  $region3: #{_forward.1} parent=0 // pred_check_branch
    %13 = sbr.rel (0) target = $region5
  $region4: #{_forward.1} parent=0 // pred_region
    _
  $region5: #{_forward.1} parent=0 // pred_fallthru
    _
  // Predicated region
  $region6: #{_forward.1} parent=0 // pred_check
    _
  $region7: #{_forward.1} parent=0 // pred_check_branch
    %15 = sbr.rel (0) target = $region9
  $region8: #{_forward.1} parent=0 // pred_region
    _
  $region9: #{_forward.1} parent=0 // pred_fallthru
    _
  // Predicated region
  $region10: #{_forward.1} parent=0 // pred_check
    _
  $region11: #{_forward.1} parent=0 // pred_check_branch
    %17 = sbr.rel (0) target = $region13
  $region12: #{_forward.1} parent=0 // pred_region
    _
  $region13: #{_forward.1} parent=0 // pred_fallthru
    _
  // Predicated region
  $region14: #{_forward.1} parent=0 // pred_check
    _
  $region15: #{_forward.1} parent=0 // pred_check_branch
    %19 = sbr.rel (0) target = $region17
  $region16: #{_forward.1} parent=0 // pred_region
    _
  $region17: #{_forward.1} parent=0 // pred_fallthru
    _
  // Predicated region
  $region18: #{_forward.1} parent=0 // pred_check
    _
  $region19: #{_forward.1} parent=0 // pred_check_branch
    %21 = sbr.rel (0) target = $region21
  $region20: #{_forward.1} parent=0 // pred_region
    _
  $region21: #{_forward.1} parent=0 // pred_fallthru
    _
  // Predicated region
  $region22: #{_forward.1} parent=0 // pred_check
    _
  $region23: #{_forward.1} parent=0 // pred_check_branch
    %23 = sbr.rel (0) target = $region25
  $region24: #{_forward.1} parent=0 // pred_region
    _
  $region25: #{_forward.1} parent=0 // pred_fallthru
    _
  // Predicated region
  $region26: #{_forward.1} parent=0 // pred_check
    _
  $region27: #{_forward.1} parent=0 // pred_check_branch
    %25 = sbr.rel (0) target = $region29
  $region28: #{_forward.1} parent=0 // pred_region
    _
  $region29: #{_forward.1} parent=0 // pred_fallthru
    _
  %v27 = vld [vmem:[%s0] sm:$0xf]
  %v28 = vld [vmem:[%s0 + $0x4] sm:$0xf]
  %v29 = vld [vmem:[%s1] sm:$0xf]
  %v30 = vld [vmem:[%s1 + $0x4] sm:$0xf]
  %v31 = vld [vmem:[%s1 + $0x8] sm:$0xf]
  %v32 = vld [vmem:[%s1 + $0xc] sm:$0xf]
  %v33 = vld [vmem:[%s2] sm:$0x1]
  %v35 = vlaneseq
  %v36 = vshrl.u32 %v35, 7
  %v37 = vsub.s32 0, %v36
  %v38 = vrot.slane %v33, %v37
  %v42 = vunpack.c.l.b16 %v27
  %v43 = vunpack.c.l.b16 %v28
  %v44 = vpack.c.b16 %v43, %v42
  %v49 = vunpack.c.l.b16 %v29
  %v50 = vunpack.c.l.b16 %v30
  %v51 = vunpack.c.l.b16 %v31
  %v52 = vunpack.c.l.b16 %v32
  %v53 = vpack.c.b16 %v50, %v49
  %v54 = vpack.c.b16 %v52, %v51
  %vm57 = vcmask 261120
  %v59 = vsel %vm57, %v44, 0
  %61 = vmatprep.subr.bf16.mxu0 0
  %62 = vmatpush1.bf16.msra.mxu0 %v53
  %63 = vmatprep.subr.bf16.mxu0 0
  %64 = vmatpush1.bf16.msra.mxu0 %v54
  %65 = vmatprep.subr.bf16.mxu0 0
  %66 = vmatpush1.bf16.msra.mxu0 0
  %67 = vmatprep.subr.bf16.mxu0 0
  %68 = vmatpush1.bf16.msra.mxu0 0
  %69 = vmatprep.subr.bf16.mxu0 0
  %70 = vmatpush1.bf16.msra.mxu0 0
  %71 = vmatprep.subr.bf16.mxu0 0
  %72 = vmatpush1.bf16.msra.mxu0 0
  %73 = vmatprep.subr.bf16.mxu0 0
  %74 = vmatpush1.bf16.msra.mxu0 0
  %75 = vmatprep.subr.bf16.mxu0 0
  %76 = vmatpush1.bf16.msra.mxu0 0
  %77 = vmatprep.subr.bf16.mxu0 0
  %78 = vmatpush1.bf16.msra.mxu0 0
  %79 = vmatprep.subr.bf16.mxu0 0
  %80 = vmatpush1.bf16.msra.mxu0 0
  %81 = vmatprep.subr.bf16.mxu0 0
  %82 = vmatpush1.bf16.msra.mxu0 0
  %83 = vmatprep.subr.bf16.mxu0 0
  %84 = vmatpush1.bf16.msra.mxu0 0
  %85 = vmatprep.subr.bf16.mxu0 0
  %86 = vmatpush1.bf16.msra.mxu0 0
  %87 = vmatprep.subr.bf16.mxu0 0
  %88 = vmatpush1.bf16.msra.mxu0 0
  %89 = vmatprep.subr.bf16.mxu0 0
  %90 = vmatpush1.bf16.msra.mxu0 0
  %91 = vmatprep.subr.bf16.mxu0 0
  %92 = vmatpush1.bf16.msra.mxu0 0
  %93 = vmatprep.mubr.bf16.mxu0 0
  %94 = vmatmul.mubr.bf16.gmra.mrb[0].mxu0 %v59
  %v95 = vpop.f32.mrb[0].mxu0
  %v96 = vadd.f32 %v38, %v95
  %v97 = vpop.f32.mrb[0].mxu0
  %v98 = vpop.f32.mrb[0].mxu0
  %v99 = vadd.f32 %v38, %v98
  %v100 = vpop.f32.mrb[0].mxu0
  %101 = vdwg.mxu0
  %v102 = vmax.f32 %v96, 0.0
  %v103 = vmax.f32 %v99, 0.0
  %v104 = vpack.c.bf16 %v103, %v102
  %v105 = vld [vmem:[%s3] sm:$0xf]
  %v106 = vld [vmem:[%s3 + $0x4] sm:$0xf]
  %v107 = vld [vmem:[%s3 + $0x8] sm:$0xf]
  %v108 = vld [vmem:[%s3 + $0xc] sm:$0xf]
  %v109 = vld [vmem:[%s4] sm:$0x1]
  %v111 = vlaneseq
  %v112 = vshrl.u32 %v111, 7
  %v113 = vsub.s32 0, %v112
  %v114 = vrot.slane %v109, %v113
  %v120 = vunpack.c.l.b16 %v105
  %v121 = vunpack.c.l.b16 %v106
  %v122 = vunpack.c.l.b16 %v107
  %v123 = vunpack.c.l.b16 %v108
  %v124 = vpack.c.b16 %v121, %v120
  %v125 = vpack.c.b16 %v123, %v122
  %v129 = vsel %vm57, %v104, 0
  %131 = vmatprep.subr.bf16.mxu0 0
  %132 = vmatpush1.bf16.msra.mxu0 %v124
  %133 = vmatprep.subr.bf16.mxu0 0
  %134 = vmatpush1.bf16.msra.mxu0 %v125
  %135 = vmatprep.subr.bf16.mxu0 0
  %136 = vmatpush1.bf16.msra.mxu0 0
  %137 = vmatprep.subr.bf16.mxu0 0
  %138 = vmatpush1.bf16.msra.mxu0 0
  %139 = vmatprep.subr.bf16.mxu0 0
  %140 = vmatpush1.bf16.msra.mxu0 0
  %141 = vmatprep.subr.bf16.mxu0 0
  %142 = vmatpush1.bf16.msra.mxu0 0
  %143 = vmatprep.subr.bf16.mxu0 0
  %144 = vmatpush1.bf16.msra.mxu0 0
  %145 = vmatprep.subr.bf16.mxu0 0
  %146 = vmatpush1.bf16.msra.mxu0 0
  %147 = vmatprep.subr.bf16.mxu0 0
  %148 = vmatpush1.bf16.msra.mxu0 0
  %149 = vmatprep.subr.bf16.mxu0 0
  %150 = vmatpush1.bf16.msra.mxu0 0
  %151 = vmatprep.subr.bf16.mxu0 0
  %152 = vmatpush1.bf16.msra.mxu0 0
  %153 = vmatprep.subr.bf16.mxu0 0
  %154 = vmatpush1.bf16.msra.mxu0 0
  %155 = vmatprep.subr.bf16.mxu0 0
  %156 = vmatpush1.bf16.msra.mxu0 0
  %157 = vmatprep.subr.bf16.mxu0 0
  %158 = vmatpush1.bf16.msra.mxu0 0
  %159 = vmatprep.subr.bf16.mxu0 0
  %160 = vmatpush1.bf16.msra.mxu0 0
  %161 = vmatprep.subr.bf16.mxu0 0
  %162 = vmatpush1.bf16.msra.mxu0 0
  %163 = vmatprep.mubr.bf16.mxu0 0
  %164 = vmatmul.mubr.bf16.gmra.mrb[0].mxu0 %v129
  %v165 = vpop.f32.mrb[0].mxu0
  %v166 = vadd.f32 %v114, %v165
  %v167 = vpop.f32.mrb[0].mxu0
  %v168 = vpop.f32.mrb[0].mxu0
  %v169 = vadd.f32 %v114, %v168
  %v170 = vpop.f32.mrb[0].mxu0
  %171 = vdwg.mxu0
  %v172 = vmax.f32 %v166, 0.0
  %v173 = vmax.f32 %v169, 0.0
  %v174 = vpack.c.bf16 %v173, %v172
  %v175 = vld [vmem:[%s5] sm:$0xf]
  %v176 = vld [vmem:[%s5 + $0x4] sm:$0xf]
  %v177 = vld [vmem:[%s5 + $0x8] sm:$0xf]
  %v178 = vld [vmem:[%s5 + $0xc] sm:$0xf]
  %v179 = vld [vmem:[%s6] sm:$0x1]
  %v181 = vlaneseq
  %v182 = vshrl.u32 %v181, 7
  %v183 = vsub.s32 0, %v182
  %v184 = vrot.slane %v179, %v183
  %v190 = vunpack.c.l.b16 %v175
  %v191 = vunpack.c.l.b16 %v176
  %v192 = vunpack.c.l.b16 %v177
  %v193 = vunpack.c.l.b16 %v178
  %v194 = vpack.c.b16 %v191, %v190
  %v195 = vpack.c.b16 %v193, %v192
  %v199 = vsel %vm57, %v174, 0
  %201 = vmatprep.subr.bf16.mxu0 0
  %202 = vmatpush1.bf16.msra.mxu0 %v194
  %203 = vmatprep.subr.bf16.mxu0 0
  %204 = vmatpush1.bf16.msra.mxu0 %v195
  %205 = vmatprep.subr.bf16.mxu0 0
  %206 = vmatpush1.bf16.msra.mxu0 0
  %207 = vmatprep.subr.bf16.mxu0 0
  %208 = vmatpush1.bf16.msra.mxu0 0
  %209 = vmatprep.subr.bf16.mxu0 0
  %210 = vmatpush1.bf16.msra.mxu0 0
  %211 = vmatprep.subr.bf16.mxu0 0
  %212 = vmatpush1.bf16.msra.mxu0 0
  %213 = vmatprep.subr.bf16.mxu0 0
  %214 = vmatpush1.bf16.msra.mxu0 0
  %215 = vmatprep.subr.bf16.mxu0 0
  %216 = vmatpush1.bf16.msra.mxu0 0
  %217 = vmatprep.subr.bf16.mxu0 0
  %218 = vmatpush1.bf16.msra.mxu0 0
  %219 = vmatprep.subr.bf16.mxu0 0
  %220 = vmatpush1.bf16.msra.mxu0 0
  %221 = vmatprep.subr.bf16.mxu0 0
  %222 = vmatpush1.bf16.msra.mxu0 0
  %223 = vmatprep.subr.bf16.mxu0 0
  %224 = vmatpush1.bf16.msra.mxu0 0
  %225 = vmatprep.subr.bf16.mxu0 0
  %226 = vmatpush1.bf16.msra.mxu0 0
  %227 = vmatprep.subr.bf16.mxu0 0
  %228 = vmatpush1.bf16.msra.mxu0 0
  %229 = vmatprep.subr.bf16.mxu0 0
  %230 = vmatpush1.bf16.msra.mxu0 0
  %231 = vmatprep.subr.bf16.mxu0 0
  %232 = vmatpush1.bf16.msra.mxu0 0
  %233 = vmatprep.mubr.bf16.mxu0 0
  %234 = vmatmul.mubr.bf16.gmra.mrb[0].mxu0 %v199
  %v235 = vpop.f32.mrb[0].mxu0
  %v236 = vadd.f32 %v184, %v235
  %v237 = vpop.f32.mrb[0].mxu0
  %v238 = vpop.f32.mrb[0].mxu0
  %v239 = vadd.f32 %v184, %v238
  %v240 = vpop.f32.mrb[0].mxu0
  %241 = vdwg.mxu0
  %vm242 = vcmask 64512
  %243 = vst.msk [vmem:[%s7] sm:$0xff] %vm242, %v236
  %244 = vst.msk [vmem:[%s7 + $0x8] sm:$0xff] %vm242, %v239
  // Predicated region
  $region30: #{_forward.1} parent=0 // pred_check
    _
  $region31: #{_forward.1} parent=0 // pred_check_branch
    %246 = sbr.rel (0) target = $region33
  $region32: #{_forward.1} parent=0 // pred_region
    _
  $region33: #{_forward.1} parent=0 // pred_fallthru
    _
  // Predicated region
  $region34: #{_forward.1} parent=0 // pred_check
    _
  $region35: #{_forward.1} parent=0 // pred_check_branch
    %248 = sbr.rel (0) target = $region37
  $region36: #{_forward.1} parent=0 // pred_region
    _
  $region37: #{_forward.1} parent=0 // pred_fallthru
    _

</llo_original>
